<compile_context>
chip_gen: v7x
topology: tpu7x:2x2x1
jax: 0.10.0
libtpu: 0.0.40
codegen_flags: <defaults>
</compile_context>

<pallas_src>
import jax
import jax.numpy as jnp
from jax import lax
from jax.experimental import pallas as pl
from jax.experimental.pallas import tpu as pltpu


def _gate_pool_kernel(params_ref, x_ref, o_ref):
    # params_ref (SMEM, f32): [softmax(alpha)[0], softmax(alpha)[1] / 9]
    c_max = params_ref[0]
    c_avg9 = params_ref[1]

    bc, H, W = x_ref.shape
    Ho = H // 2
    Wo = o_ref.shape[2]
    f32 = jnp.float32

    # ---- in-kernel stride-2 row deinterleave (sublane-strided reads, no repack) ----
    xe = x_ref[:, pl.ds(0, Ho, stride=2), :].astype(f32)   # x[2*oh,     :]
    xo = x_ref[:, pl.ds(1, Ho, stride=2), :].astype(f32)   # x[2*oh + 1, :]

    # Small broadcastable boundary masks (top / left padding of the 3x3 window).
    row0 = lax.broadcasted_iota(jnp.int32, (1, Ho, 1), 1) == 0   # oh == 0
    col0 = lax.broadcasted_iota(jnp.int32, (1, 1, W), 2) == 0    # w  == 0

    # Previous output-row's odd input row: x[2*oh - 1, :]; padding when oh == 0.
    xo_u = pltpu.roll(xo, 1, axis=1)

    # ---- vertical 3-tap reduce at full input width W ----
    # For the padded tap substitute an always-valid tap (max) or 0 (avg, since
    # AvgPool2d default count_include_pad=True => divisor is always 9).
    vmax = jnp.maximum(jnp.maximum(xe, xo), jnp.where(row0, xe, xo_u))
    vsum = xe + xo + jnp.where(row0, 0.0, xo_u)

    # ---- horizontal 3-tap at full width ----
    # Output column ow uses input columns {2ow-1, 2ow, 2ow+1}; evaluate the 3-tap
    # centred at every w; only even w survive the final decimation, so the right
    # roll's wrap (at odd w = W-1) never reaches the output.
    vmax_l = pltpu.roll(vmax, 1, axis=2)        # value at w-1 (wrap at w=0: masked)
    vmax_r = pltpu.roll(vmax, W - 1, axis=2)    # value at w+1
    vsum_l = pltpu.roll(vsum, 1, axis=2)
    vsum_r = pltpu.roll(vsum, W - 1, axis=2)

    hmax = jnp.maximum(jnp.maximum(vmax, vmax_r), jnp.where(col0, vmax, vmax_l))
    hsum = vsum + vsum_r + jnp.where(col0, 0.0, vsum_l)

    # Softmax-gated combine (1/9 already folded into c_avg9), still at width W.
    y = c_max * hmax + c_avg9 * hsum                        # (bc, Ho, W) f32

    # ---- exact lane decimation (keep even columns) on the idle MXU ----
    # sel[w, ow] = 1 if w == 2*ow else 0.  Single 1 per output column => each bf16
    # matmul term is exact; the 3-way bf16 split of y recovers f32 exactly.
    iw = lax.broadcasted_iota(jnp.int32, (W, Wo), 0)
    io = lax.broadcasted_iota(jnp.int32, (W, Wo), 1)
    sel = jnp.broadcast_to((iw == 2 * io).astype(jnp.bfloat16), (bc, W, Wo))

    y1 = y.astype(jnp.bfloat16)
    r1 = y - y1.astype(f32)
    y2 = r1.astype(jnp.bfloat16)
    y3 = (r1 - y2.astype(f32)).astype(jnp.bfloat16)

    out = (jnp.einsum("bhw,bwo->bho", y1, sel, preferred_element_type=f32)
           + jnp.einsum("bhw,bwo->bho", y2, sel, preferred_element_type=f32)
           + jnp.einsum("bhw,bwo->bho", y3, sel, preferred_element_type=f32))
    o_ref[...] = out.astype(o_ref.dtype)


def _round_up(n, m):
    return ((n + m - 1) // m) * m


def gate_pool(x, alpha_pool, *, gate=True, block_bc=None):
    """GatePool forward: c = softmax(alpha); c0*MaxPool(x) + c1*AvgPool(x).

    x: (B, C, H, W) with even H, W.  Returns (out (B,C,H//2,W//2), lat_pool (2,)).
    """
    B, C, H, W = x.shape
    if H % 2 or W % 2:
        raise ValueError("GatePool Pallas kernel requires even H and W "
                         "(kernel_size=3, stride=2, padding=1).")
    BC, Ho, Wo = B * C, H // 2, W // 2

    # Gate coefficients computed host-side (tiny 2-vector), kept in float32.
    alpha = jnp.asarray(alpha_pool, dtype=jnp.float32)
    if gate:
        c = jax.nn.softmax(alpha)
    else:
        c = jax.nn.one_hot(jnp.argmax(alpha), 2, dtype=jnp.float32)
    params = jnp.stack([c[0], c[1] / 9.0]).astype(jnp.float32)

    # lat_pool bookkeeping values from the torch module (no effect on the output).
    nelem = x.size
    lat_pool = jnp.array([(1360 * 0.01 * nelem / B + 0.4) * 0.75,
                          0.01 * nelem / B], dtype=jnp.float32)

    # Free, contiguous reshape -- no extra HBM pass.
    x3 = x.reshape(BC, H, W)

    # ---- block sizing from the real per-image working set ----
    itemsize = x.dtype.itemsize
    Hpad, Wpad = _round_up(H, 8), _round_up(W, 128)
    Hopad, Wopad = _round_up(Ho, 8), _round_up(Wo, 128)
    in_per_bc = Hpad * Wpad * itemsize            # stored input (layout padded)
    tmp_per_bc = 10 * Hopad * Wpad * 4            # ~10 live f32 full-width planes
    out_per_bc = Hopad * Wopad * max(itemsize, 4)
    per_bc = 2 * in_per_bc + tmp_per_bc + 2 * out_per_bc   # incl. double buffers

    if block_bc is None:
        target = 12 * 1024 * 1024                 # per-step working-set target
        block_bc = max(1, min(BC, target // max(1, per_bc)))
        if BC >= 8:
            # >= ~8 grid steps: each v7x TensorCore gets >= 4 pipelined steps.
            block_bc = min(block_bc, pl.cdiv(BC, 8))
    grid = (pl.cdiv(BC, block_bc),)

    # VMEM limit from the footprint with >=2x headroom, clamped for v7x (64 MiB).
    est = block_bc * per_bc
    vmem_limit = int(min(40 * 1024 * 1024, max(32 * 1024 * 1024, 2 * est)))

    out3 = pl.pallas_call(
        _gate_pool_kernel,
        out_shape=jax.ShapeDtypeStruct((BC, Ho, Wo), x.dtype),
        grid_spec=pltpu.PrefetchScalarGridSpec(
            num_scalar_prefetch=0,
            grid=grid,
            in_specs=[
                pl.BlockSpec(memory_space=pltpu.MemorySpace.SMEM),          # params
                pl.BlockSpec((block_bc, H, W), lambda i: (i, 0, 0)),        # x rows
            ],
            out_specs=pl.BlockSpec((block_bc, Ho, Wo), lambda i: (i, 0, 0)),
        ),
        compiler_params=pltpu.CompilerParams(
            dimension_semantics=("parallel",),
            vmem_limit_bytes=vmem_limit,
        ),
    )(params, x3)

    return out3.reshape(B, C, Ho, Wo), lat_pool


def gate_pool_ref(x, alpha_pool, gate=True):
    """Pure-JAX reference matching the PyTorch module."""
    alpha = jnp.asarray(alpha_pool, dtype=jnp.float32)
    if gate:
        c = jax.nn.softmax(alpha)
    else:
        c = jax.nn.one_hot(jnp.argmax(alpha), 2, dtype=jnp.float32)
    pads = ((0, 0), (0, 0), (1, 1), (1, 1))
    mx = lax.reduce_window(x, -jnp.inf, lax.max, (1, 1, 3, 3), (1, 1, 2, 2), pads)
    sm = lax.reduce_window(x, 0.0, lax.add, (1, 1, 3, 3), (1, 1, 2, 2), pads)
    return c[0] * mx + c[1] * (sm / 9.0)


if __name__ == "__main__":
    key = jax.random.PRNGKey(0)
    kx, ka, kx2 = jax.random.split(key, 3)

    # Case 1: softmax gate, BC divisible by block size.
    B, C, H, W = 2, 4, 16, 16
    x = jax.random.normal(kx, (B, C, H, W), dtype=jnp.float32)
    # Module init is alpha_pool = [0, 0]; use a small deterministic perturbation so
    # the softmax gate is non-trivial.
    alpha_pool = 0.5 * jax.random.normal(ka, (2,), dtype=jnp.float32)

    out, lat_pool = gate_pool(x, alpha_pool, gate=True)
    out = jax.block_until_ready(out)
    ref = gate_pool_ref(x, alpha_pool, gate=True)
    assert out.shape == (B, C, H // 2, W // 2)
    assert jnp.allclose(out, ref, atol=1e-5, rtol=1e-5), float(
        jnp.max(jnp.abs(out - ref)))

    # Case 2: ragged grid (BC % block_bc != 0) + gate=False (argmax one-hot) path.
    B2, C2, H2, W2 = 1, 3, 32, 32
    x2 = jax.random.normal(kx2, (B2, C2, H2, W2), dtype=jnp.float32)
    out2, _ = gate_pool(x2, alpha_pool, gate=False, block_bc=2)
    out2 = jax.block_until_ready(out2)
    ref2 = gate_pool_ref(x2, alpha_pool, gate=False)
    assert jnp.allclose(out2, ref2, atol=1e-5, rtol=1e-5), float(
        jnp.max(jnp.abs(out2 - ref2)))

    print("KERNEL_OK")
</pallas_src>

<mosaic_0001>
module attributes {stable_mosaic.version = 11 : i64} {
  func.func @_gate_pool_kernel(%arg0: i32, %arg1: memref<2xf32, #tpu.memory_space<smem>>, %arg2: memref<1x16x16xf32, #tpu.memory_space<vmem>>, %arg3: memref<1x8x8xf32, #tpu.memory_space<vmem>>) attributes {dimension_semantics = [#tpu.dimension_semantics<parallel>], iteration_bounds = array<i64: 8>, scalar_prefetch = 0 : i64, scratch_operands = 0 : i64, tpu.core_type = #tpu.core_type<tc>, window_params = [{transform_indices = @transform_0, window_bounds = array<i64: 2>}, {transform_indices = @transform_1, window_bounds = array<i64: 1, 16, 16>}, {transform_indices = @transform_2, window_bounds = array<i64: 1, 8, 8>}]} {
    %c0 = arith.constant 0 : index
    %0 = memref.load %arg1[%c0] : memref<2xf32, #tpu.memory_space<smem>>
    %c1 = arith.constant 1 : index
    %1 = memref.load %arg1[%c1] : memref<2xf32, #tpu.memory_space<smem>>
    %c0_0 = arith.constant 0 : index
    %c0_1 = arith.constant 0 : index
    %c0_2 = arith.constant 0 : index
    %2 = tpu.strided_load %arg2[%c0_0, %c0_1, %c0_2] {strides = array<i32: 1, 2, 1>} : memref<1x16x16xf32, #tpu.memory_space<vmem>>, vector<1x8x16xf32>
    %c0_3 = arith.constant 0 : index
    %c1_4 = arith.constant 1 : index
    %c0_5 = arith.constant 0 : index
    %3 = tpu.strided_load %arg2[%c0_3, %c1_4, %c0_5] {strides = array<i32: 1, 2, 1>} : memref<1x16x16xf32, #tpu.memory_space<vmem>>, vector<1x8x16xf32>
    %4 = tpu.iota {dimensions = array<i32: 1>} : vector<1x8x1xi32>
    %c0_i32 = arith.constant 0 : i32
    %5 = vector.broadcast %c0_i32 : i32 to vector<1x8x1xi32>
    %6 = arith.cmpi eq, %4, %5 : vector<1x8x1xi32>
    %7 = tpu.iota {dimensions = array<i32: 2>} : vector<1x1x16xi32>
    %c0_i32_6 = arith.constant 0 : i32
    %8 = vector.broadcast %c0_i32_6 : i32 to vector<1x1x16xi32>
    %9 = arith.cmpi eq, %7, %8 : vector<1x1x16xi32>
    %c1_i32 = arith.constant 1 : i32
    %10 = tpu.dynamic_rotate %3 by %c1_i32 dim 1 : vector<1x8x16xf32>, i32 -> vector<1x8x16xf32>
    %11 = arith.maximumf %2, %3 : vector<1x8x16xf32>
    %12 = vector.shape_cast %6 : vector<1x8x1xi1> to vector<1x8x1xi1>
    %13 = vector.broadcast %12 : vector<1x8x1xi1> to vector<1x8x16xi1>
    %14 = arith.select %13, %2, %10 : vector<1x8x16xi1>, vector<1x8x16xf32>
    %15 = arith.maximumf %11, %14 : vector<1x8x16xf32>
    %16 = arith.addf %2, %3 : vector<1x8x16xf32>
    %cst = arith.constant 0.000000e+00 : f32
    %17 = vector.shape_cast %6 : vector<1x8x1xi1> to vector<1x8x1xi1>
    %18 = vector.broadcast %17 : vector<1x8x1xi1> to vector<1x8x16xi1>
    %19 = vector.broadcast %cst : f32 to vector<1x8x16xf32>
    %20 = arith.select %18, %19, %10 : vector<1x8x16xi1>, vector<1x8x16xf32>
    %21 = arith.addf %16, %20 : vector<1x8x16xf32>
    %c1_i32_7 = arith.constant 1 : i32
    %22 = tpu.dynamic_rotate %15 by %c1_i32_7 dim 2 : vector<1x8x16xf32>, i32 -> vector<1x8x16xf32>
    %c15_i32 = arith.constant 15 : i32
    %23 = tpu.dynamic_rotate %15 by %c15_i32 dim 2 : vector<1x8x16xf32>, i32 -> vector<1x8x16xf32>
    %c1_i32_8 = arith.constant 1 : i32
    %24 = tpu.dynamic_rotate %21 by %c1_i32_8 dim 2 : vector<1x8x16xf32>, i32 -> vector<1x8x16xf32>
    %c15_i32_9 = arith.constant 15 : i32
    %25 = tpu.dynamic_rotate %21 by %c15_i32_9 dim 2 : vector<1x8x16xf32>, i32 -> vector<1x8x16xf32>
    %26 = arith.maximumf %15, %23 : vector<1x8x16xf32>
    %27 = vector.shape_cast %9 : vector<1x1x16xi1> to vector<1x1x16xi1>
    %28 = vector.broadcast %27 : vector<1x1x16xi1> to vector<1x8x16xi1>
    %29 = arith.select %28, %15, %22 : vector<1x8x16xi1>, vector<1x8x16xf32>
    %30 = arith.maximumf %26, %29 : vector<1x8x16xf32>
    %31 = arith.addf %21, %25 : vector<1x8x16xf32>
    %cst_10 = arith.constant 0.000000e+00 : f32
    %32 = vector.shape_cast %9 : vector<1x1x16xi1> to vector<1x1x16xi1>
    %33 = vector.broadcast %32 : vector<1x1x16xi1> to vector<1x8x16xi1>
    %34 = vector.broadcast %cst_10 : f32 to vector<1x8x16xf32>
    %35 = arith.select %33, %34, %24 : vector<1x8x16xi1>, vector<1x8x16xf32>
    %36 = arith.addf %31, %35 : vector<1x8x16xf32>
    %37 = vector.broadcast %0 : f32 to vector<1x8x16xf32>
    %38 = arith.mulf %37, %30 : vector<1x8x16xf32>
    %39 = vector.broadcast %1 : f32 to vector<1x8x16xf32>
    %40 = arith.mulf %39, %36 : vector<1x8x16xf32>
    %41 = arith.addf %38, %40 : vector<1x8x16xf32>
    %42 = tpu.iota {dimensions = array<i32: 0>} : vector<16x8xi32>
    %43 = tpu.iota {dimensions = array<i32: 1>} : vector<16x8xi32>
    %c2_i32 = arith.constant 2 : i32
    %44 = vector.broadcast %c2_i32 : i32 to vector<16x8xi32>
    %45 = arith.muli %44, %43 : vector<16x8xi32>
    %46 = arith.cmpi eq, %42, %45 : vector<16x8xi32>
    %47 = arith.extui %46 : vector<16x8xi1> to vector<16x8xi32>
    %48 = arith.sitofp %47 : vector<16x8xi32> to vector<16x8xf32>
    %49 = arith.truncf %48 : vector<16x8xf32> to vector<16x8xbf16>
    %50 = vector.shape_cast %49 : vector<16x8xbf16> to vector<1x16x8xbf16>
    %51 = arith.truncf %41 : vector<1x8x16xf32> to vector<1x8x16xbf16>
    %52 = arith.extf %51 : vector<1x8x16xbf16> to vector<1x8x16xf32>
    %53 = arith.subf %41, %52 : vector<1x8x16xf32>
    %54 = arith.truncf %53 : vector<1x8x16xf32> to vector<1x8x16xbf16>
    %55 = arith.extf %54 : vector<1x8x16xbf16> to vector<1x8x16xf32>
    %56 = arith.subf %53, %55 : vector<1x8x16xf32>
    %57 = arith.truncf %56 : vector<1x8x16xf32> to vector<1x8x16xbf16>
    "tpu.trace_start"() <{level = 10 : i32, message = "bhw,bwo->bho"}> : () -> ()
    %cst_11 = arith.constant dense<0.000000e+00> : vector<1x8x8xf32>
    %58 = tpu.matmul %51, %50, %cst_11 {dimension_numbers = #tpu.dot_dimension_numbers<[2], [1], [1], [2], [0, 0, 0, 1, 1, 2], [0], [0]>} : vector<1x8x16xbf16>, vector<1x16x8xbf16>, vector<1x8x8xf32> -> vector<1x8x8xf32>
    %cst_12 = arith.constant dense<0.000000e+00> : vector<1x8x8xf32>
    %59 = tpu.matmul %54, %50, %cst_12 {dimension_numbers = #tpu.dot_dimension_numbers<[2], [1], [1], [2], [0, 0, 0, 1, 1, 2], [0], [0]>} : vector<1x8x16xbf16>, vector<1x16x8xbf16>, vector<1x8x8xf32> -> vector<1x8x8xf32>
    "tpu.trace_stop"() : () -> ()
    %60 = arith.addf %58, %59 : vector<1x8x8xf32>
    "tpu.trace_start"() <{level = 10 : i32, message = "bhw,bwo->bho"}> : () -> ()
    %cst_13 = arith.constant dense<0.000000e+00> : vector<1x8x8xf32>
    %61 = tpu.matmul %57, %50, %cst_13 {dimension_numbers = #tpu.dot_dimension_numbers<[2], [1], [1], [2], [0, 0, 0, 1, 1, 2], [0], [0]>} : vector<1x8x16xbf16>, vector<1x16x8xbf16>, vector<1x8x8xf32> -> vector<1x8x8xf32>
    "tpu.trace_stop"() : () -> ()
    %62 = arith.addf %60, %61 : vector<1x8x8xf32>
    %c0_14 = arith.constant 0 : index
    %c0_15 = arith.constant 0 : index
    %c0_16 = arith.constant 0 : index
    %63 = vector.load %arg3[%c0_14, %c0_15, %c0_16] : memref<1x8x8xf32, #tpu.memory_space<vmem>>, vector<1x8x8xf32>
    tpu.vector_store %arg3[%c0_14, %c0_15, %c0_16], %62 {strides = array<i32>} : memref<1x8x8xf32, #tpu.memory_space<vmem>>, vector<1x8x8xf32>,
    return
  }
  func.func @transform_0(%arg0: i32) -> i32 {
    %c0_i32 = arith.constant 0 : i32
    %c0_i32_0 = arith.constant 0 : i32
    return %c0_i32 : i32
  }
  func.func @transform_1(%arg0: i32) -> (i32, i32, i32) {
    %c0_i32 = arith.constant 0 : i32
    %c0_i32_0 = arith.constant 0 : i32
    %c0_i32_1 = arith.constant 0 : i32
    return %arg0, %c0_i32, %c0_i32_0 : i32, i32, i32
  }
  func.func @transform_2(%arg0: i32) -> (i32, i32, i32) {
    %c0_i32 = arith.constant 0 : i32
    %c0_i32_0 = arith.constant 0 : i32
    %c0_i32_1 = arith.constant 0 : i32
    return %arg0, %c0_i32, %c0_i32_0 : i32, i32, i32
  }
}

</mosaic_0001>

<llo_original>
// kernel: tpu_custom_call.1
$region0: #{tpu_custom_call.1}
  #allocation0 [shape = 'u32[]', space=smem, size = 0x4, offset = 0x4, fixed_abs, tag = 'smem constant byte address 0x4 - core index']
  #allocation1 [shape = 'u32[144,128]{1,0:T(1,128)}', space=vmem, size = 0x12000, scoped, tag = 'internal scratch']
  %s0 = inlined_call_operand.hbm [shape: f32[2], index: 0, kind: input, shape index: {}]
  %s1 = inlined_call_operand.hbm [shape: f32[8,16,16], index: 1, kind: input, shape index: {}]
  %s2 = inlined_call_operand.hbm [shape: f32[8,8,8], index: 2, kind: output, shape index: {}]
  %s3 = sld [smem:[#allocation0]]
  $region49: #{tpu_custom_call.1} parent=0
    _
  %s5 = ssub.s32 1, %s3
  %s6 = scalar_select 0, %s5, %s3
  $region1: #{tpu_custom_call.1} parent=0
    #allocation2 [shape = 'u8[512]{0}', space=smem, size = 0x200, scoped, tag = 'input window, operand 0, single buffered']
    #allocation3 [shape = 's32[2]{0}', space=sflag, size = 0x8, scoped, tag = 'scoped memory for tpu_custom_call.1']
    #allocation4 [shape = 's32[2]{0}', space=sflag, size = 0x8, scoped, tag = 'scoped memory for tpu_custom_call.1']
    #allocation5 [shape = 's32[2]{0}', space=sflag, size = 0x8, scoped, tag = 'scoped memory for tpu_custom_call.1']
    #allocation6 [shape = 'u8[16384]{0}', space=vmem, size = 0x4000, scoped, tag = 'input window, operand 1']
    #allocation7 [shape = 'u8[8192]{0}', space=vmem, size = 0x2000, scoped, tag = 'output window, operand 0']
    %7 = vsyncpa [#allocation5], 0
    %8 = vsyncpa [#allocation3], 0
    %s9 = scalar_lea.sflag [#allocation3], 1
    %10 = vsyncpa %s9, 0
    %11 = vsyncpa [#allocation4], 0
    %s12 = scalar_lea.sflag [#allocation4], 1
    %13 = vsyncpa %s12, 0
    loop: start=0, step=1, limit=10
    $region2: #{tpu_custom_call.1} parent=1 // loop_pre_header
      _
    $region3: #{tpu_custom_call.1} parent=1 // loop_header
      %s15 = sphi 0, %s19
      %p16 = scmp.ge.s32.totalorder %s15, 10
      %s23 = sphi 0, %s23
      %s25 = sphi 0, %s23
      %s26 = sphi 0, %s25
      %s40 = sphi 0, %s26
      %s46 = sphi 0, %s48
      %s49 = sphi 0, %s46
      %s50 = sphi 0, %s49
      %s66 = sphi 0, %s50
      %s72 = sphi 0, %s74
      %s75 = sphi 0, %s72
      %s76 = sphi 0, %s75
      %s92 = sphi 0, %s76
    $region4: #{tpu_custom_call.1} parent=1 // loop_header_branch
      %18 = sbr.rel (%p16) target = $region8
    $region5: #{tpu_custom_call.1} parent=1 // loop_body
      %s20 = ssub.s32 %s15, 1
      %s21 = ssub.s32 %s15, 2
      %s22 = sadd.s32 %s15, 1
      %s24 = sadd.s32 %s23, 1
      %p27 = scmp.eq.s32.totalorder %s15, 7
      %p28 = scmp.ne.s32.totalorder %s23, %s25
      %p29 = scmp.eq.s32.totalorder %s15, 0
      %p30 = por %p28, %p29
      %p31 = scmp.ne.s32.totalorder %s23, %s25
      %p32 = scmp.eq.s32.totalorder %s20, 7
      %p33 = por %p31, %p32
      %p34 = scmp.ne.s32.totalorder %s25, %s26
      %p35 = scmp.eq.s32.totalorder %s20, 0
      %p36 = por %p34, %p35
      %p37 = scmp.ne.s32.totalorder %s25, %s26
      %p38 = scmp.eq.s32.totalorder %s21, 7
      %p39 = por %p37, %p38
      %p41 = scmp.ne.s32.totalorder %s26, %s40
      %p42 = scmp.eq.s32.totalorder %s21, 0
      %p43 = por %p41, %p42
      %s44 = ssub.s32 %s15, %s22
      %p45 = scmp.eq.s32.totalorder %s44, 0
      %s47 = sadd.s32 %s46, 1
      %s48 = scalar_select %p45, %s46, %s47
      %p51 = pneg %p45
      %p52 = scmp.eq.s32.totalorder %s15, 7
      %p53 = por %p51, %p52
      %p54 = scmp.ne.s32.totalorder %s46, %s49
      %p55 = scmp.eq.s32.totalorder %s15, 0
      %p56 = por %p54, %p55
      %p57 = scmp.ne.s32.totalorder %s46, %s49
      %p58 = scmp.eq.s32.totalorder %s20, 7
      %p59 = por %p57, %p58
      %p60 = scmp.ne.s32.totalorder %s49, %s50
      %p61 = scmp.eq.s32.totalorder %s20, 0
      %p62 = por %p60, %p61
      %p63 = scmp.ne.s32.totalorder %s49, %s50
      %p64 = scmp.eq.s32.totalorder %s21, 7
      %p65 = por %p63, %p64
      %p67 = scmp.ne.s32.totalorder %s50, %s66
      %p68 = scmp.eq.s32.totalorder %s21, 0
      %p69 = por %p67, %p68
      %s70 = ssub.s32 %s15, %s22
      %p71 = scmp.eq.s32.totalorder %s70, 0
      %s73 = sadd.s32 %s72, 1
      %s74 = scalar_select %p71, %s72, %s73
      %p77 = pneg %p71
      %p78 = scmp.eq.s32.totalorder %s15, 7
      %p79 = por %p77, %p78
      %p80 = scmp.ne.s32.totalorder %s72, %s75
      %p81 = scmp.eq.s32.totalorder %s15, 0
      %p82 = por %p80, %p81
      %p83 = scmp.ne.s32.totalorder %s72, %s75
      %p84 = scmp.eq.s32.totalorder %s20, 7
      %p85 = por %p83, %p84
      %p86 = scmp.ne.s32.totalorder %s75, %s76
      %p87 = scmp.eq.s32.totalorder %s20, 0
      %p88 = por %p86, %p87
      %p89 = scmp.ne.s32.totalorder %s75, %s76
      %p90 = scmp.eq.s32.totalorder %s21, 7
      %p91 = por %p89, %p90
      %p93 = scmp.ne.s32.totalorder %s76, %s92
      %p94 = scmp.eq.s32.totalorder %s21, 0
      %p95 = por %p93, %p94
      %p96 = scmp.le.s32.totalorder 1, %s15
      %p97 = scmp.lt.s32.totalorder %s15, 9
      %p98 = pnand %p96, %p97
      %p99 = pneg %p98
      // Predicated region
      $region9: #{tpu_custom_call.1} parent=5 // pred_check
        _
      $region10: #{tpu_custom_call.1} parent=5 // pred_check_branch
        %101 = sbr.rel (%p98) target = $region12
      $region11: #{tpu_custom_call.1} parent=5 // pred_region
        %s102 = ssub.s32 %s15, 1
        // Predicated region
        $region13: #{tpu_custom_call.1} parent=11 // pred_check
          %p103 = pneg %p36
        $region14: #{tpu_custom_call.1} parent=11 // pred_check_branch
          %105 = sbr.rel (%p103) target = $region16
        $region15: #{tpu_custom_call.1} parent=11 // pred_region
          %s107 = ssub.s32 16, 16
          %108 = vsyncadd [#allocation5], %s107
          %111 = dma.hbm_to_smem %s0, 16, [#allocation2], [#allocation5]
        $region16: #{tpu_custom_call.1} parent=11 // pred_fallthru
          _
      $region12: #{tpu_custom_call.1} parent=5 // pred_fallthru
        _
      %p112 = scmp.lt.s32.totalorder %s15, 8
      // Predicated region
      $region17: #{tpu_custom_call.1} parent=5 // pred_check
        %p113 = pneg %p112
      $region18: #{tpu_custom_call.1} parent=5 // pred_check_branch
        %115 = sbr.rel (%p113) target = $region20
      $region19: #{tpu_custom_call.1} parent=5 // pred_region
        // Predicated region
        $region21: #{tpu_custom_call.1} parent=19 // pred_check
          %p116 = pneg %p56
        $region22: #{tpu_custom_call.1} parent=19 // pred_check_branch
          %118 = sbr.rel (%p116) target = $region24
        $region23: #{tpu_custom_call.1} parent=19 // pred_region
          %s119 = sand.u32 %s46, 1
          %s120 = scalar_lea.sflag [#allocation3], %s119
          %s121 = sand.u32 %s46, 1
          %s122 = smul.addr %s121, 16
          %s123 = scalar_lea.vmem [#allocation6], %s122
          %s125 = ssub.s32 256, 256
          %126 = vsyncadd %s120, %s125
          %s127 = smul.addr %s15, 2
          %s128 = smul.addr %s127, 128
          %s129 = scalar_lea.hbm %s1, %s128
          %s130 = sshll.u32 %s123, 4
          %s131 = int_to_ptr.vmem [resolvable:$true] %s130
          %136 = dma.hbm_to_vmem [thread:$0]  %s129, 256, %s131, %s120, 128, 128, 8
        $region24: #{tpu_custom_call.1} parent=19 // pred_fallthru
          _
      $region20: #{tpu_custom_call.1} parent=5 // pred_fallthru
        _
      %p137 = scmp.le.s32.totalorder 1, %s15
      %p138 = scmp.lt.s32.totalorder %s15, 9
      %p139 = pnand %p137, %p138
      %p140 = pneg %p139
      // Predicated region
      $region25: #{tpu_custom_call.1} parent=5 // pred_check
        _
      $region26: #{tpu_custom_call.1} parent=5 // pred_check_branch
        %142 = sbr.rel (%p139) target = $region28
      $region27: #{tpu_custom_call.1} parent=5 // pred_region
        %s143 = ssub.s32 %s15, 1
        // Predicated region
        $region29: #{tpu_custom_call.1} parent=27 // pred_check
          %p144 = pneg %p36
        $region30: #{tpu_custom_call.1} parent=27 // pred_check_branch
          %146 = sbr.rel (%p144) target = $region32
        $region31: #{tpu_custom_call.1} parent=27 // pred_region
          %147 = dma.done [#allocation5], 16
        $region32: #{tpu_custom_call.1} parent=27 // pred_fallthru
          _
        %s148 = sand.u32 %s49, 1
        %s149 = scalar_lea.sflag [#allocation3], %s148
        %s150 = sand.u32 %s49, 1
        %s151 = smul.addr %s150, 16
        %s152 = scalar_lea.vmem [#allocation6], %s151
        // Predicated region
        $region33: #{tpu_custom_call.1} parent=27 // pred_check
          %p153 = pneg %p62
        $region34: #{tpu_custom_call.1} parent=27 // pred_check_branch
          %155 = sbr.rel (%p153) target = $region36
        $region35: #{tpu_custom_call.1} parent=27 // pred_region
          %156 = dma.done %s149, 256
        $region36: #{tpu_custom_call.1} parent=27 // pred_fallthru
          _
        %157 = sfence
        %p158 = pneg %p36
        %p159 = pneg %p33
        %s160 = sand.u32 %s49, 1
        %s161 = scalar_lea.sflag [#allocation3], %s160
        %s162 = sand.u32 %s49, 1
        %s163 = smul.addr %s162, 16
        %s164 = scalar_lea.vmem [#allocation6], %s163
        %p165 = pneg %p62
        %p166 = pneg %p59
        %p167 = pneg %p88
        %p168 = pneg %p85
        %s169 = sand.u32 %s75, 1
        %s170 = scalar_lea.sflag [#allocation4], %s169
        %s171 = sand.u32 %s75, 1
        %s172 = smul.addr %s171, 8
        %s173 = scalar_lea.vmem [#allocation7], %s172
        %s175 = sld [smem:[#allocation2]]
        %s176 = sld [smem:[#allocation2 + $0x1]]
        %v177 = vld [vmem:[%s152] ss:$2 sm:$0xff]
        %s178 = scalar_lea.vmem %s152, 1 [#allocation6]
        %v179 = vld [vmem:[%s178] ss:$2 sm:$0xff]
        %v180 = vlaneseq
        %v181 = vshrl.u32 %v180, 7
        %vm182 = vcmp.eq.s32.totalorder %v181, 0
        %v183 = vlaneseq
        %v184 = vand.u32 %v183, 127
        %vm185 = vcmp.eq.s32.totalorder %v184, 0
        %v186 = vrot.slane %v179, 7
        %v187 = vmax.f32 %v177, %v179
        %v188 = vsel %vm182, 1, 0
        %vm189 = vcmp.eq.s32.totalorder %v188, 1
        %v190 = vsel %vm189, %v177, %v186
        %v191 = vmax.f32 %v187, %v190
        %v192 = vadd.f32 %v177, %v179
        %v193 = vsel %vm189, 0.0, %v186
        %v194 = vadd.f32 %v192, %v193
        %vm195 = vcmask 1047680
        %196 = vrot.lane.b32.xlu0 %v191, 16
        %v197 = vpop.permute.xlu0 %196
        %v198 = vsel %vm195, %v197, %v191
        %199 = vrot.lane.b32.xlu0 %v198, 16
        %v200 = vpop.permute.xlu0 %199
        %v201 = vsel %vm195, %v200, %v191
        %202 = vrot.lane.b32.xlu0 %v194, 16
        %v203 = vpop.permute.xlu0 %202
        %v204 = vsel %vm195, %v203, %v194
        %205 = vrot.lane.b32.xlu0 %v204, 16
        %v206 = vpop.permute.xlu0 %205
        %v207 = vsel %vm195, %v206, %v194
        %209 = vrot.lane.b32.xlu0 %v201, 127
        %v210 = vpop.permute.xlu0 %209
        %v212 = vmax.f32 %v191, %v210
        %v213 = vsel %vm185, 1, 0
        %vm214 = vcmp.eq.s32.totalorder %v213, 1
        %215 = vrot.lane.b32.xlu0 %v201, 113
        %v216 = vpop.permute.xlu0 %215
        %v218 = vsel %vm214, %v191, %v216
        %v219 = vmax.f32 %v212, %v218
        %221 = vrot.lane.b32.xlu0 %v207, 127
        %v222 = vpop.permute.xlu0 %221
        %v224 = vadd.f32 %v194, %v222
        %225 = vrot.lane.b32.xlu0 %v207, 113
        %v226 = vpop.permute.xlu0 %225
        %v228 = vsel %vm214, 0.0, %v226
        %v229 = vadd.f32 %v224, %v228
        %v230 = vstv %s175
        %v231 = vmul.f32 %v230, %v219
        %v232 = vstv %s176
        %v233 = vmul.f32 %v232, %v229
        %v234 = vadd.f32 %v231, %v233
        %v235 = vadd.s32 %v181, 8
        %v236 = vmul.u32 %v184, 2
        %vm237 = vcmp.eq.s32.totalorder %v181, %v236
        %vm238 = vcmp.eq.s32.totalorder %v235, %v236
        %v239 = vsel %vm237, 1, 0
        %v240 = vsel %vm238, 1, 0
        %v241 = vcvt.s32.f32 %v239
        %v242 = vcvt.s32.f32 %v240
        %v243 = vpack.c.bf16 %v242, %v241
        %v244 = vpack.c.bf16 %v234, %v234
        %v245 = vunpack.c.l.bf16 %v244
        %v246 = vsub.f32 %v234, %v245
        %v247 = vpack.c.bf16 %v246, %v246
        %v248 = vunpack.c.l.bf16 %v247
        %v249 = vsub.f32 %v246, %v248
        %v250 = vpack.c.bf16 %v249, %v249
        %vm251 = vcmask 130048
        %v253 = vsel %vm251, %v247, 0
        %255 = vmatprep.subr.bf16.mxu0 0
        %256 = vmatpush1.bf16.msra.mxu0 %v243
        %257 = vmatprep.subr.bf16.mxu0 0
        %258 = vmatpush1.bf16.msra.mxu0 0
        %259 = vmatprep.subr.bf16.mxu0 0
        %260 = vmatpush1.bf16.msra.mxu0 0
        %261 = vmatprep.subr.bf16.mxu0 0
        %262 = vmatpush1.bf16.msra.mxu0 0
        %263 = vmatprep.subr.bf16.mxu0 0
        %264 = vmatpush1.bf16.msra.mxu0 0
        %265 = vmatprep.subr.bf16.mxu0 0
        %266 = vmatpush1.bf16.msra.mxu0 0
        %267 = vmatprep.subr.bf16.mxu0 0
        %268 = vmatpush1.bf16.msra.mxu0 0
        %269 = vmatprep.subr.bf16.mxu0 0
        %270 = vmatpush1.bf16.msra.mxu0 0
        %271 = vmatprep.subr.bf16.mxu0 0
        %272 = vmatpush1.bf16.msra.mxu0 0
        %273 = vmatprep.subr.bf16.mxu0 0
        %274 = vmatpush1.bf16.msra.mxu0 0
        %275 = vmatprep.subr.bf16.mxu0 0
        %276 = vmatpush1.bf16.msra.mxu0 0
        %277 = vmatprep.subr.bf16.mxu0 0
        %278 = vmatpush1.bf16.msra.mxu0 0
        %279 = vmatprep.subr.bf16.mxu0 0
        %280 = vmatpush1.bf16.msra.mxu0 0
        %281 = vmatprep.subr.bf16.mxu0 0
        %282 = vmatpush1.bf16.msra.mxu0 0
        %283 = vmatprep.subr.bf16.mxu0 0
        %284 = vmatpush1.bf16.msra.mxu0 0
        %285 = vmatprep.subr.bf16.mxu0 0
        %286 = vmatpush1.bf16.msra.mxu0 0
        %287 = vmatprep.mubr.bf16.mxu0 0
        %288 = vmatmul.mubr.bf16.gmra.mrb[0].mxu0 %v253
        %v289 = vpop.f32.mrb[0].mxu0
        %v290 = vadd.f32 0.0, %v289
        %v291 = vpop.f32.mrb[0].mxu0
        %v292 = vpop.f32.mrb[0].mxu0
        %v293 = vpop.f32.mrb[0].mxu0
        %294 = vdwg.mxu0
        %v296 = vsel %vm251, %v244, 0
        %298 = vmatprep.subr.bf16.mxu0 0
        %299 = vmatpush1.bf16.msra.mxu0 %v243
        %300 = vmatprep.subr.bf16.mxu0 0
        %301 = vmatpush1.bf16.msra.mxu0 0
        %302 = vmatprep.subr.bf16.mxu0 0
        %303 = vmatpush1.bf16.msra.mxu0 0
        %304 = vmatprep.subr.bf16.mxu0 0
        %305 = vmatpush1.bf16.msra.mxu0 0
        %306 = vmatprep.subr.bf16.mxu0 0
        %307 = vmatpush1.bf16.msra.mxu0 0
        %308 = vmatprep.subr.bf16.mxu0 0
        %309 = vmatpush1.bf16.msra.mxu0 0
        %310 = vmatprep.subr.bf16.mxu0 0
        %311 = vmatpush1.bf16.msra.mxu0 0
        %312 = vmatprep.subr.bf16.mxu0 0
        %313 = vmatpush1.bf16.msra.mxu0 0
        %314 = vmatprep.subr.bf16.mxu0 0
        %315 = vmatpush1.bf16.msra.mxu0 0
        %316 = vmatprep.subr.bf16.mxu0 0
        %317 = vmatpush1.bf16.msra.mxu0 0
        %318 = vmatprep.subr.bf16.mxu0 0
        %319 = vmatpush1.bf16.msra.mxu0 0
        %320 = vmatprep.subr.bf16.mxu0 0
        %321 = vmatpush1.bf16.msra.mxu0 0
        %322 = vmatprep.subr.bf16.mxu0 0
        %323 = vmatpush1.bf16.msra.mxu0 0
        %324 = vmatprep.subr.bf16.mxu0 0
        %325 = vmatpush1.bf16.msra.mxu0 0
        %326 = vmatprep.subr.bf16.mxu0 0
        %327 = vmatpush1.bf16.msra.mxu0 0
        %328 = vmatprep.subr.bf16.mxu0 0
        %329 = vmatpush1.bf16.msra.mxu0 0
        %330 = vmatprep.mubr.bf16.mxu0 0
        %331 = vmatmul.mubr.bf16.gmra.mrb[0].mxu0 %v296
        %v332 = vpop.f32.mrb[0].mxu0
        %v333 = vadd.f32 %v290, %v332
        %v334 = vpop.f32.mrb[0].mxu0
        %v335 = vpop.f32.mrb[0].mxu0
        %v336 = vpop.f32.mrb[0].mxu0
        %337 = vdwg.mxu0
        %v339 = vsel %vm251, %v250, 0
        %341 = vmatprep.subr.bf16.mxu0 0
        %342 = vmatpush1.bf16.msra.mxu0 %v243
        %343 = vmatprep.subr.bf16.mxu0 0
        %344 = vmatpush1.bf16.msra.mxu0 0
        %345 = vmatprep.subr.bf16.mxu0 0
        %346 = vmatpush1.bf16.msra.mxu0 0
        %347 = vmatprep.subr.bf16.mxu0 0
        %348 = vmatpush1.bf16.msra.mxu0 0
        %349 = vmatprep.subr.bf16.mxu0 0
        %350 = vmatpush1.bf16.msra.mxu0 0
        %351 = vmatprep.subr.bf16.mxu0 0
        %352 = vmatpush1.bf16.msra.mxu0 0
        %353 = vmatprep.subr.bf16.mxu0 0
        %354 = vmatpush1.bf16.msra.mxu0 0
        %355 = vmatprep.subr.bf16.mxu0 0
        %356 = vmatpush1.bf16.msra.mxu0 0
        %357 = vmatprep.subr.bf16.mxu0 0
        %358 = vmatpush1.bf16.msra.mxu0 0
        %359 = vmatprep.subr.bf16.mxu0 0
        %360 = vmatpush1.bf16.msra.mxu0 0
        %361 = vmatprep.subr.bf16.mxu0 0
        %362 = vmatpush1.bf16.msra.mxu0 0
        %363 = vmatprep.subr.bf16.mxu0 0
        %364 = vmatpush1.bf16.msra.mxu0 0
        %365 = vmatprep.subr.bf16.mxu0 0
        %366 = vmatpush1.bf16.msra.mxu0 0
        %367 = vmatprep.subr.bf16.mxu0 0
        %368 = vmatpush1.bf16.msra.mxu0 0
        %369 = vmatprep.subr.bf16.mxu0 0
        %370 = vmatpush1.bf16.msra.mxu0 0
        %371 = vmatprep.subr.bf16.mxu0 0
        %372 = vmatpush1.bf16.msra.mxu0 0
        %373 = vmatprep.mubr.bf16.mxu0 0
        %374 = vmatmul.mubr.bf16.gmra.mrb[0].mxu0 %v339
        %v375 = vpop.f32.mrb[0].mxu0
        %v376 = vadd.f32 0.0, %v375
        %v377 = vpop.f32.mrb[0].mxu0
        %v378 = vpop.f32.mrb[0].mxu0
        %v379 = vpop.f32.mrb[0].mxu0
        %380 = vdwg.mxu0
        %v381 = vadd.f32 %v333, %v376
        %vm382 = vcmask 64512
        %383 = vst.msk [vmem:[%s173] sm:$0xff] %vm382, %v381
        %s384 = sand.u32 %s75, 1
        %s385 = scalar_lea.sflag [#allocation4], %s384
        %s386 = sand.u32 %s75, 1
        %s387 = smul.addr %s386, 8
        %s388 = scalar_lea.vmem [#allocation7], %s387
        // Predicated region
        $region37: #{tpu_custom_call.1} parent=27 // pred_check
          %p389 = pneg %p85
        $region38: #{tpu_custom_call.1} parent=27 // pred_check_branch
          %391 = sbr.rel (%p389) target = $region40
        $region39: #{tpu_custom_call.1} parent=27 // pred_region
          %s393 = ssub.s32 128, 128
          %394 = vsyncadd %s385, %s393
          %s395 = smul.addr %s20, 128
          %s396 = scalar_lea.hbm %s2, %s395
          %s398 = sshll.u32 %s388, 4
          %s399 = int_to_ptr.vmem [resolvable:$true] %s398
          %401 = dma.vmem_to_hbm [thread:$0]  %s399, 128, %s396, %s385
        $region40: #{tpu_custom_call.1} parent=27 // pred_fallthru
          _
      $region28: #{tpu_custom_call.1} parent=5 // pred_fallthru
        _
      %p402 = scmp.le.s32.totalorder 2, %s15
      // Predicated region
      $region41: #{tpu_custom_call.1} parent=5 // pred_check
        %p403 = pneg %p402
      $region42: #{tpu_custom_call.1} parent=5 // pred_check_branch
        %405 = sbr.rel (%p403) target = $region44
      $region43: #{tpu_custom_call.1} parent=5 // pred_region
        %s406 = ssub.s32 %s15, 2
        // Predicated region
        $region45: #{tpu_custom_call.1} parent=43 // pred_check
          %p407 = pneg %p91
        $region46: #{tpu_custom_call.1} parent=43 // pred_check_branch
          %409 = sbr.rel (%p407) target = $region48
        $region47: #{tpu_custom_call.1} parent=43 // pred_region
          %s410 = sand.u32 %s76, 1
          %s411 = scalar_lea.sflag [#allocation4], %s410
          %s412 = sand.u32 %s76, 1
          %s413 = smul.addr %s412, 8
          %s414 = scalar_lea.vmem [#allocation7], %s413
          %415 = dma.done %s411, 128
        $region48: #{tpu_custom_call.1} parent=43 // pred_fallthru
          _
      $region44: #{tpu_custom_call.1} parent=5 // pred_fallthru
        _
    $region6: #{tpu_custom_call.1} parent=1 // loop_footer
      %s19 = sadd.s32 1, %s15
    $region7: #{tpu_custom_call.1} parent=1 // loop_footer_branch
      %14 = sbr.rel target = $region3
    $region8: #{tpu_custom_call.1} parent=1 // loop_exit
      _
    %416 = vsyncpa [#allocation3], 1
    %s417 = scalar_lea.sflag [#allocation3], 1
    %418 = vsyncpa %s417, 1
    %419 = vsyncpa [#allocation4], 1
    %s420 = scalar_lea.sflag [#allocation4], 1
    %421 = vsyncpa %s420, 1
    %422 = vsyncpa [#allocation5], 1
    %s423 = scalar_lea.sflag [#allocation5], 1
    %424 = vsyncpa %s423, 1

</llo_original>
